<compile_context>
chip_gen: v5e
topology: v5e:2x2
jax: 0.10.0
libtpu: 0.0.40
codegen_flags: <defaults>
</compile_context>

<pallas_src>
import jax
import jax.numpy as jnp
from jax.experimental import pallas as pl
from jax.experimental.pallas import tpu as pltpu


def _reduce_state_kernel(h_ref, c_ref, w_ref, b_ref, o_ref):
    # h_ref, c_ref : (2, TB, H)  VMEM  (num_directions, batch_tile, hid)
    # w_ref        : (2, H, H)   VMEM  w_ref[d] = W_H[:, d*H:(d+1)*H].T (resident)
    # b_ref        : (1, H)      VMEM  (resident)
    # o_ref        : (2, TB, H)  VMEM  row 0 = h output, row 1 = c output
    w0 = w_ref[0]                                  # (H, H) fwd-direction weights
    w1 = w_ref[1]                                  # (H, H) bwd-direction weights
    bias = b_ref[...].astype(jnp.float32)          # (1, H), broadcast over rows

    # h path: h_i @ W^T  ==  h[0] @ w0 + h[1] @ w1  (no concat, no W^T copy)
    acc_h = jnp.dot(h_ref[0], w0, preferred_element_type=jnp.float32)
    acc_h = acc_h + jnp.dot(h_ref[1], w1, preferred_element_type=jnp.float32)
    o_ref[0] = jnp.maximum(acc_h + bias, 0.0).astype(o_ref.dtype)

    # c path (the PyTorch module also routes c through transformH)
    acc_c = jnp.dot(c_ref[0], w0, preferred_element_type=jnp.float32)
    acc_c = acc_c + jnp.dot(c_ref[1], w1, preferred_element_type=jnp.float32)
    o_ref[1] = jnp.maximum(acc_c + bias, 0.0).astype(o_ref.dtype)

    # TODO(synk): for H <= 128 a single fused K=2H contraction per state would
    # fill the MXU depth better (needs an h_i-layout input or a lane concat).
    # TODO(synk): when H < 128 the output stores are lane-masked (vst.msk);
    # a lane-dense (2, B*H) output slab would need an in-kernel relayout.


def _round8_up(n):
    return ((n + 7) // 8) * 8


def _vmem_budgets():
    """Return (tile_budget_bytes, vmem_limit_bytes), generation-aware."""
    try:
        cap = int(pltpu.get_tpu_info().vmem_capacity_bytes)  # 64 MiB v7x, 128 MiB v5e/v6e
    except Exception:
        cap = 64 << 20                                        # conservative fallback
    vmem_limit = min(int(cap * 0.90), 100 << 20)              # Mosaic scratch headroom
    tile_budget = int(vmem_limit * 0.75)
    return tile_budget, vmem_limit


def _choose_batch_tile(B, H, itemsize, tile_budget):
    """Largest batch tile that fits the pipelined VMEM budget, forcing >= 2
    grid steps whenever B >= 9 so v7x's second TensorCore gets work."""
    resident = 2 * H * H * itemsize + 8 * max(H, 128) * itemsize  # single-buffered W + bias
    # Per batch-row pipelined bytes: h, c, out blocks (double-buffered) plus
    # f32 accumulator/epilogue intermediates.
    per_row = 3 * 2 * (2 * H) * itemsize + 2 * (2 * H) * 4
    avail = max(tile_budget - resident, 8 * per_row)
    tb_fit = max(8, (avail // per_row) // 8 * 8)

    if B <= 8:
        return B                                   # tiny batch: one full-extent block
    tb_half = max(8, _round8_up(-(-B // 2)))       # round8(ceil(B/2)) -> >= 2 grid steps
    return int(min(tb_fit, tb_half))

    # TODO(synk): for H where 8*H^2 bytes approach the VMEM budget (H >~ 2048
    # on v7x), add a K-tiling "arbitrary" grid axis with an f32 accumulator
    # instead of keeping W fully resident.


def _build_call(B, H, tb, out_dtype, vmem_limit, single_buffer_residents):
    grid = (pl.cdiv(B, tb),)
    if single_buffer_residents:
        # Constant index maps -> double-buffering only wastes VMEM; Buffered(1)
        # halves the bytes held by the resident weight (matters at large H).
        w_spec = pl.BlockSpec((2, H, H), lambda i: (0, 0, 0),
                              pipeline_mode=pl.Buffered(1))
        b_spec = pl.BlockSpec((1, H), lambda i: (0, 0),
                              pipeline_mode=pl.Buffered(1))
    else:
        w_spec = pl.BlockSpec((2, H, H), lambda i: (0, 0, 0))
        b_spec = pl.BlockSpec((1, H), lambda i: (0, 0))

    return pl.pallas_call(
        _reduce_state_kernel,
        out_shape=jax.ShapeDtypeStruct((2, B, H), out_dtype),
        grid_spec=pltpu.PrefetchScalarGridSpec(
            num_scalar_prefetch=0,
            grid=grid,
            in_specs=[
                pl.BlockSpec((2, tb, H), lambda i: (0, i, 0)),   # h state
                pl.BlockSpec((2, tb, H), lambda i: (0, i, 0)),   # c state
                w_spec,                                          # W (VMEM-resident)
                b_spec,                                          # bias (VMEM-resident)
            ],
            out_specs=pl.BlockSpec((2, tb, H), lambda i: (0, i, 0)),
        ),
        compiler_params=pltpu.CompilerParams(
            dimension_semantics=("parallel",),   # shard batch tiles across TCs (v7x)
            vmem_limit_bytes=vmem_limit,
        ),
    )


def reduce_state(hiddens, w_h, b_h):
    """hiddens: ((2, B, H), (2, B, H)); w_h: (H, 2H); b_h: (H,).

    Returns ((1, B, H), (1, B, H)) = relu(transformH(.)) applied to BOTH
    states, matching the PyTorch module's forward.  bf16 inputs also work:
    the MXU accumulates in f32 and the bias/ReLU epilogue stays in f32.
    """
    h_r, c_r = hiddens
    D, B, H = h_r.shape
    assert D == 2 and w_h.shape == (H, 2 * H) and b_h.shape == (H,)

    # One-time wrapper-side weight relayout (plain XLA, not per grid step):
    # w_split[d, k, o] = W[o, d*H + k]  ==  W[:, d*H:(d+1)*H].T
    w_split = jnp.transpose(w_h.reshape(H, 2, H), (1, 2, 0))
    b2d = b_h.reshape(1, H)

    tile_budget, vmem_limit = _vmem_budgets()
    tb = _choose_batch_tile(B, H, h_r.dtype.itemsize, tile_budget)
    # NOTE: a ragged final batch tile (B % tb != 0) computes on padded rows;
    # rows are independent and the padded output is discarded, so it is safe.

    args = (h_r, c_r, w_split, b2d)
    try:
        out = _build_call(B, H, tb, h_r.dtype, vmem_limit, True)(*args)
    except Exception:
        # Fallback if this Pallas version rejects pipeline_mode=Buffered(1).
        out = _build_call(B, H, tb, h_r.dtype, vmem_limit, False)(*args)

    # out[0] is the h path, out[1] the c path; slices keep the (1, B, H) shape.
    return out[0:1], out[1:2]


def init_params(hid_dim, key):
    """Deterministic init mimicking nn.Linear defaults (uniform +-1/sqrt(fan_in))."""
    k_w, k_b = jax.random.split(key)
    fan_in = 2 * hid_dim
    bound = 1.0 / jnp.sqrt(fan_in)
    w_h = jax.random.uniform(k_w, (hid_dim, 2 * hid_dim),
                             minval=-bound, maxval=bound, dtype=jnp.float32)
    b_h = jax.random.uniform(k_b, (hid_dim,),
                             minval=-bound, maxval=bound, dtype=jnp.float32)
    # NOTE: transformC is initialized in the PyTorch module but never used in
    # its forward (both paths call transformH); we reproduce that behavior.
    return w_h, b_h


if __name__ == "__main__":
    def ref_forward(x, w, b):
        B, H = x.shape[1], w.shape[0]
        xi = jnp.transpose(x, (1, 0, 2)).reshape(B, 2 * H)
        return jnp.maximum(xi @ w.T + b, 0.0)[None]

    def check(batch, hid_dim, key):
        k_h, k_c, k_p = jax.random.split(key, 3)
        h_r = jax.random.normal(k_h, (2, batch, hid_dim), dtype=jnp.float32)
        c_r = jax.random.normal(k_c, (2, batch, hid_dim), dtype=jnp.float32)
        w_h, b_h = init_params(hid_dim, k_p)
        h_o, c_o = reduce_state((h_r, c_r), w_h, b_h)
        h_o = jax.block_until_ready(h_o)
        c_o = jax.block_until_ready(c_o)
        assert h_o.shape == (1, batch, hid_dim)
        assert c_o.shape == (1, batch, hid_dim)
        assert jnp.allclose(h_o, ref_forward(h_r, w_h, b_h), atol=1e-5)
        assert jnp.allclose(c_o, ref_forward(c_r, w_h, b_h), atol=1e-5)

    # Module-consistent small demo shape (single full-extent block).
    check(batch=2, hid_dim=32, key=jax.random.PRNGKey(0))
    # Multi-tile path: >= 2 grid steps, lane-exact H.
    check(batch=16, hid_dim=128, key=jax.random.PRNGKey(1))

    print("KERNEL_OK")
</pallas_src>

<mosaic_0001>
module attributes {stable_mosaic.version = 11 : i64} {
  func.func @_reduce_state_kernel(%arg0: i32, %arg1: memref<2x2x32xf32, #tpu.memory_space<vmem>>, %arg2: memref<2x2x32xf32, #tpu.memory_space<vmem>>, %arg3: memref<2x32x32xf32, #tpu.memory_space<vmem>>, %arg4: memref<1x32xf32, #tpu.memory_space<vmem>>, %arg5: memref<2x2x32xf32, #tpu.memory_space<vmem>>) attributes {dimension_semantics = [#tpu.dimension_semantics<parallel>], iteration_bounds = array<i64: 1>, scalar_prefetch = 0 : i64, scratch_operands = 0 : i64, tpu.core_type = #tpu.core_type<tc>, window_params = [{transform_indices = @transform_0, window_bounds = array<i64: 2, 2, 32>}, {transform_indices = @transform_1, window_bounds = array<i64: 2, 2, 32>}, {pipeline_mode = #tpu.pipeline_mode<synchronous>, transform_indices = @transform_2, window_bounds = array<i64: 2, 32, 32>}, {pipeline_mode = #tpu.pipeline_mode<synchronous>, transform_indices = @transform_3, window_bounds = array<i64: 1, 32>}, {transform_indices = @transform_4, window_bounds = array<i64: 2, 2, 32>}]} {
    %c0 = arith.constant 0 : index
    %c0_0 = arith.constant 0 : index
    %c0_1 = arith.constant 0 : index
    %0 = vector.load %arg3[%c0, %c0_0, %c0_1] : memref<2x32x32xf32, #tpu.memory_space<vmem>>, vector<1x32x32xf32>
    %1 = vector.shape_cast %0 : vector<1x32x32xf32> to vector<32x32xf32>
    %c1 = arith.constant 1 : index
    %c0_2 = arith.constant 0 : index
    %c0_3 = arith.constant 0 : index
    %2 = vector.load %arg3[%c1, %c0_2, %c0_3] : memref<2x32x32xf32, #tpu.memory_space<vmem>>, vector<1x32x32xf32>
    %3 = vector.shape_cast %2 : vector<1x32x32xf32> to vector<32x32xf32>
    %c0_4 = arith.constant 0 : index
    %c0_5 = arith.constant 0 : index
    %4 = vector.load %arg4[%c0_4, %c0_5] : memref<1x32xf32, #tpu.memory_space<vmem>>, vector<1x32xf32>
    %c0_6 = arith.constant 0 : index
    %c0_7 = arith.constant 0 : index
    %c0_8 = arith.constant 0 : index
    %5 = vector.load %arg1[%c0_6, %c0_7, %c0_8] : memref<2x2x32xf32, #tpu.memory_space<vmem>>, vector<1x2x32xf32>
    %6 = vector.shape_cast %5 : vector<1x2x32xf32> to vector<2x32xf32>
    %cst = arith.constant dense<0.000000e+00> : vector<2x32xf32>
    %7 = tpu.matmul %6, %1, %cst {dimension_numbers = #tpu.dot_dimension_numbers<[1], [0], [0], [1], [0, 0, 1, 1], [], []>} : vector<2x32xf32>, vector<32x32xf32>, vector<2x32xf32> -> vector<2x32xf32>
    %c1_9 = arith.constant 1 : index
    %c0_10 = arith.constant 0 : index
    %c0_11 = arith.constant 0 : index
    %8 = vector.load %arg1[%c1_9, %c0_10, %c0_11] : memref<2x2x32xf32, #tpu.memory_space<vmem>>, vector<1x2x32xf32>
    %9 = vector.shape_cast %8 : vector<1x2x32xf32> to vector<2x32xf32>
    %cst_12 = arith.constant dense<0.000000e+00> : vector<2x32xf32>
    %10 = tpu.matmul %9, %3, %cst_12 {dimension_numbers = #tpu.dot_dimension_numbers<[1], [0], [0], [1], [0, 0, 1, 1], [], []>} : vector<2x32xf32>, vector<32x32xf32>, vector<2x32xf32> -> vector<2x32xf32>
    %11 = arith.addf %7, %10 : vector<2x32xf32>
    %12 = vector.broadcast %4 : vector<1x32xf32> to vector<2x32xf32>
    %13 = arith.addf %11, %12 : vector<2x32xf32>
    %cst_13 = arith.constant 0.000000e+00 : f32
    %14 = vector.broadcast %cst_13 : f32 to vector<2x32xf32>
    %15 = arith.maximumf %13, %14 : vector<2x32xf32>
    %c0_14 = arith.constant 0 : index
    %c0_15 = arith.constant 0 : index
    %c0_16 = arith.constant 0 : index
    %16 = vector.load %arg5[%c0_14, %c0_15, %c0_16] : memref<2x2x32xf32, #tpu.memory_space<vmem>>, vector<1x2x32xf32>
    %17 = vector.shape_cast %16 : vector<1x2x32xf32> to vector<2x32xf32>
    %18 = vector.shape_cast %15 : vector<2x32xf32> to vector<1x2x32xf32>
    tpu.vector_store %arg5[%c0_14, %c0_15, %c0_16], %18 {strides = array<i32>} : memref<2x2x32xf32, #tpu.memory_space<vmem>>, vector<1x2x32xf32>,
    %c0_17 = arith.constant 0 : index
    %c0_18 = arith.constant 0 : index
    %c0_19 = arith.constant 0 : index
    %19 = vector.load %arg2[%c0_17, %c0_18, %c0_19] : memref<2x2x32xf32, #tpu.memory_space<vmem>>, vector<1x2x32xf32>
    %20 = vector.shape_cast %19 : vector<1x2x32xf32> to vector<2x32xf32>
    %cst_20 = arith.constant dense<0.000000e+00> : vector<2x32xf32>
    %21 = tpu.matmul %20, %1, %cst_20 {dimension_numbers = #tpu.dot_dimension_numbers<[1], [0], [0], [1], [0, 0, 1, 1], [], []>} : vector<2x32xf32>, vector<32x32xf32>, vector<2x32xf32> -> vector<2x32xf32>
    %c1_21 = arith.constant 1 : index
    %c0_22 = arith.constant 0 : index
    %c0_23 = arith.constant 0 : index
    %22 = vector.load %arg2[%c1_21, %c0_22, %c0_23] : memref<2x2x32xf32, #tpu.memory_space<vmem>>, vector<1x2x32xf32>
    %23 = vector.shape_cast %22 : vector<1x2x32xf32> to vector<2x32xf32>
    %cst_24 = arith.constant dense<0.000000e+00> : vector<2x32xf32>
    %24 = tpu.matmul %23, %3, %cst_24 {dimension_numbers = #tpu.dot_dimension_numbers<[1], [0], [0], [1], [0, 0, 1, 1], [], []>} : vector<2x32xf32>, vector<32x32xf32>, vector<2x32xf32> -> vector<2x32xf32>
    %25 = arith.addf %21, %24 : vector<2x32xf32>
    %26 = vector.broadcast %4 : vector<1x32xf32> to vector<2x32xf32>
    %27 = arith.addf %25, %26 : vector<2x32xf32>
    %cst_25 = arith.constant 0.000000e+00 : f32
    %28 = vector.broadcast %cst_25 : f32 to vector<2x32xf32>
    %29 = arith.maximumf %27, %28 : vector<2x32xf32>
    %c1_26 = arith.constant 1 : index
    %c0_27 = arith.constant 0 : index
    %c0_28 = arith.constant 0 : index
    %30 = vector.load %arg5[%c1_26, %c0_27, %c0_28] : memref<2x2x32xf32, #tpu.memory_space<vmem>>, vector<1x2x32xf32>
    %31 = vector.shape_cast %30 : vector<1x2x32xf32> to vector<2x32xf32>
    %32 = vector.shape_cast %29 : vector<2x32xf32> to vector<1x2x32xf32>
    tpu.vector_store %arg5[%c1_26, %c0_27, %c0_28], %32 {strides = array<i32>} : memref<2x2x32xf32, #tpu.memory_space<vmem>>, vector<1x2x32xf32>,
    return
  }
  func.func @transform_0(%arg0: i32) -> (i32, i32, i32) {
    %c0_i32 = arith.constant 0 : i32
    %c0_i32_0 = arith.constant 0 : i32
    %c0_i32_1 = arith.constant 0 : i32
    return %c0_i32, %arg0, %c0_i32_0 : i32, i32, i32
  }
  func.func @transform_1(%arg0: i32) -> (i32, i32, i32) {
    %c0_i32 = arith.constant 0 : i32
    %c0_i32_0 = arith.constant 0 : i32
    %c0_i32_1 = arith.constant 0 : i32
    return %c0_i32, %arg0, %c0_i32_0 : i32, i32, i32
  }
  func.func @transform_2(%arg0: i32) -> (i32, i32, i32) {
    %c0_i32 = arith.constant 0 : i32
    %c0_i32_0 = arith.constant 0 : i32
    %c0_i32_1 = arith.constant 0 : i32
    %c0_i32_2 = arith.constant 0 : i32
    return %c0_i32, %c0_i32_0, %c0_i32_1 : i32, i32, i32
  }
  func.func @transform_3(%arg0: i32) -> (i32, i32) {
    %c0_i32 = arith.constant 0 : i32
    %c0_i32_0 = arith.constant 0 : i32
    %c0_i32_1 = arith.constant 0 : i32
    return %c0_i32, %c0_i32_0 : i32, i32
  }
  func.func @transform_4(%arg0: i32) -> (i32, i32, i32) {
    %c0_i32 = arith.constant 0 : i32
    %c0_i32_0 = arith.constant 0 : i32
    %c0_i32_1 = arith.constant 0 : i32
    return %c0_i32, %arg0, %c0_i32_0 : i32, i32, i32
  }
}

module attributes {stable_mosaic.version = 11 : i64} {
  func.func @_reduce_state_kernel(%arg0: i32, %arg1: memref<2x2x32xf32, #tpu.memory_space<vmem>>, %arg2: memref<2x2x32xf32, #tpu.memory_space<vmem>>, %arg3: memref<2x32x32xf32, #tpu.memory_space<vmem>>, %arg4: memref<1x32xf32, #tpu.memory_space<vmem>>, %arg5: memref<2x2x32xf32, #tpu.memory_space<vmem>>) attributes {dimension_semantics = [#tpu.dimension_semantics<parallel>], iteration_bounds = array<i64: 1>, scalar_prefetch = 0 : i64, scratch_operands = 0 : i64, tpu.core_type = #tpu.core_type<tc>, window_params = [{transform_indices = @transform_0, window_bounds = array<i64: 2, 2, 32>}, {transform_indices = @transform_1, window_bounds = array<i64: 2, 2, 32>}, {pipeline_mode = #tpu.pipeline_mode<synchronous>, transform_indices = @transform_2, window_bounds = array<i64: 2, 32, 32>}, {pipeline_mode = #tpu.pipeline_mode<synchronous>, transform_indices = @transform_3, window_bounds = array<i64: 1, 32>}, {transform_indices = @transform_4, window_bounds = array<i64: 2, 2, 32>}]} {
    %c0 = arith.constant 0 : index
    %c0_0 = arith.constant 0 : index
    %c0_1 = arith.constant 0 : index
    %0 = vector.load %arg3[%c0, %c0_0, %c0_1] : memref<2x32x32xf32, #tpu.memory_space<vmem>>, vector<1x32x32xf32>
    %1 = vector.shape_cast %0 : vector<1x32x32xf32> to vector<32x32xf32>
    %c1 = arith.constant 1 : index
    %c0_2 = arith.constant 0 : index
    %c0_3 = arith.constant 0 : index
    %2 = vector.load %arg3[%c1, %c0_2, %c0_3] : memref<2x32x32xf32, #tpu.memory_space<vmem>>, vector<1x32x32xf32>
    %3 = vector.shape_cast %2 : vector<1x32x32xf32> to vector<32x32xf32>
    %c0_4 = arith.constant 0 : index
    %c0_5 = arith.constant 0 : index
    %4 = vector.load %arg4[%c0_4, %c0_5] : memref<1x32xf32, #tpu.memory_space<vmem>>, vector<1x32xf32>
    %c0_6 = arith.constant 0 : index
    %c0_7 = arith.constant 0 : index
    %c0_8 = arith.constant 0 : index
    %5 = vector.load %arg1[%c0_6, %c0_7, %c0_8] : memref<2x2x32xf32, #tpu.memory_space<vmem>>, vector<1x2x32xf32>
    %6 = vector.shape_cast %5 : vector<1x2x32xf32> to vector<2x32xf32>
    %cst = arith.constant dense<0.000000e+00> : vector<2x32xf32>
    %7 = tpu.matmul %6, %1, %cst {dimension_numbers = #tpu.dot_dimension_numbers<[1], [0], [0], [1], [0, 0, 1, 1], [], []>} : vector<2x32xf32>, vector<32x32xf32>, vector<2x32xf32> -> vector<2x32xf32>
    %c1_9 = arith.constant 1 : index
    %c0_10 = arith.constant 0 : index
    %c0_11 = arith.constant 0 : index
    %8 = vector.load %arg1[%c1_9, %c0_10, %c0_11] : memref<2x2x32xf32, #tpu.memory_space<vmem>>, vector<1x2x32xf32>
    %9 = vector.shape_cast %8 : vector<1x2x32xf32> to vector<2x32xf32>
    %cst_12 = arith.constant dense<0.000000e+00> : vector<2x32xf32>
    %10 = tpu.matmul %9, %3, %cst_12 {dimension_numbers = #tpu.dot_dimension_numbers<[1], [0], [0], [1], [0, 0, 1, 1], [], []>} : vector<2x32xf32>, vector<32x32xf32>, vector<2x32xf32> -> vector<2x32xf32>
    %11 = arith.addf %7, %10 : vector<2x32xf32>
    %12 = vector.broadcast %4 : vector<1x32xf32> to vector<2x32xf32>
    %13 = arith.addf %11, %12 : vector<2x32xf32>
    %cst_13 = arith.constant 0.000000e+00 : f32
    %14 = vector.broadcast %cst_13 : f32 to vector<2x32xf32>
    %15 = arith.maximumf %13, %14 : vector<2x32xf32>
    %c0_14 = arith.constant 0 : index
    %c0_15 = arith.constant 0 : index
    %c0_16 = arith.constant 0 : index
    %16 = vector.load %arg5[%c0_14, %c0_15, %c0_16] : memref<2x2x32xf32, #tpu.memory_space<vmem>>, vector<1x2x32xf32>
    %17 = vector.shape_cast %16 : vector<1x2x32xf32> to vector<2x32xf32>
    %18 = vector.shape_cast %15 : vector<2x32xf32> to vector<1x2x32xf32>
    tpu.vector_store %arg5[%c0_14, %c0_15, %c0_16], %18 {strides = array<i32>} : memref<2x2x32xf32, #tpu.memory_space<vmem>>, vector<1x2x32xf32>,
    %c0_17 = arith.constant 0 : index
    %c0_18 = arith.constant 0 : index
    %c0_19 = arith.constant 0 : index
    %19 = vector.load %arg2[%c0_17, %c0_18, %c0_19] : memref<2x2x32xf32, #tpu.memory_space<vmem>>, vector<1x2x32xf32>
    %20 = vector.shape_cast %19 : vector<1x2x32xf32> to vector<2x32xf32>
    %cst_20 = arith.constant dense<0.000000e+00> : vector<2x32xf32>
    %21 = tpu.matmul %20, %1, %cst_20 {dimension_numbers = #tpu.dot_dimension_numbers<[1], [0], [0], [1], [0, 0, 1, 1], [], []>} : vector<2x32xf32>, vector<32x32xf32>, vector<2x32xf32> -> vector<2x32xf32>
    %c1_21 = arith.constant 1 : index
    %c0_22 = arith.constant 0 : index
    %c0_23 = arith.constant 0 : index
    %22 = vector.load %arg2[%c1_21, %c0_22, %c0_23] : memref<2x2x32xf32, #tpu.memory_space<vmem>>, vector<1x2x32xf32>
    %23 = vector.shape_cast %22 : vector<1x2x32xf32> to vector<2x32xf32>
    %cst_24 = arith.constant dense<0.000000e+00> : vector<2x32xf32>
    %24 = tpu.matmul %23, %3, %cst_24 {dimension_numbers = #tpu.dot_dimension_numbers<[1], [0], [0], [1], [0, 0, 1, 1], [], []>} : vector<2x32xf32>, vector<32x32xf32>, vector<2x32xf32> -> vector<2x32xf32>
    %25 = arith.addf %21, %24 : vector<2x32xf32>
    %26 = vector.broadcast %4 : vector<1x32xf32> to vector<2x32xf32>
    %27 = arith.addf %25, %26 : vector<2x32xf32>
    %cst_25 = arith.constant 0.000000e+00 : f32
    %28 = vector.broadcast %cst_25 : f32 to vector<2x32xf32>
    %29 = arith.maximumf %27, %28 : vector<2x32xf32>
    %c1_26 = arith.constant 1 : index
    %c0_27 = arith.constant 0 : index
    %c0_28 = arith.constant 0 : index
    %30 = vector.load %arg5[%c1_26, %c0_27, %c0_28] : memref<2x2x32xf32, #tpu.memory_space<vmem>>, vector<1x2x32xf32>
    %31 = vector.shape_cast %30 : vector<1x2x32xf32> to vector<2x32xf32>
    %32 = vector.shape_cast %29 : vector<2x32xf32> to vector<1x2x32xf32>
    tpu.vector_store %arg5[%c1_26, %c0_27, %c0_28], %32 {strides = array<i32>} : memref<2x2x32xf32, #tpu.memory_space<vmem>>, vector<1x2x32xf32>,
    return
  }
  func.func @transform_0(%arg0: i32) -> (i32, i32, i32) {
    %c0_i32 = arith.constant 0 : i32
    %c0_i32_0 = arith.constant 0 : i32
    %c0_i32_1 = arith.constant 0 : i32
    return %c0_i32, %arg0, %c0_i32_0 : i32, i32, i32
  }
  func.func @transform_1(%arg0: i32) -> (i32, i32, i32) {
    %c0_i32 = arith.constant 0 : i32
    %c0_i32_0 = arith.constant 0 : i32
    %c0_i32_1 = arith.constant 0 : i32
    return %c0_i32, %arg0, %c0_i32_0 : i32, i32, i32
  }
  func.func @transform_2(%arg0: i32) -> (i32, i32, i32) {
    %c0_i32 = arith.constant 0 : i32
    %c0_i32_0 = arith.constant 0 : i32
    %c0_i32_1 = arith.constant 0 : i32
    %c0_i32_2 = arith.constant 0 : i32
    return %c0_i32, %c0_i32_0, %c0_i32_1 : i32, i32, i32
  }
  func.func @transform_3(%arg0: i32) -> (i32, i32) {
    %c0_i32 = arith.constant 0 : i32
    %c0_i32_0 = arith.constant 0 : i32
    %c0_i32_1 = arith.constant 0 : i32
    return %c0_i32, %c0_i32_0 : i32, i32
  }
  func.func @transform_4(%arg0: i32) -> (i32, i32, i32) {
    %c0_i32 = arith.constant 0 : i32
    %c0_i32_0 = arith.constant 0 : i32
    %c0_i32_1 = arith.constant 0 : i32
    return %c0_i32, %arg0, %c0_i32_0 : i32, i32, i32
  }
}

</mosaic_0001>

<llo_original>
// kernel: tpu_custom_call.1
$region0: #{tpu_custom_call.1}
  #allocation0 [shape = 'u32[]', space=smem, size = 0x4, offset = 0x4, fixed_abs, tag = 'smem constant byte address 0x4 - core index']
  #allocation1 [shape = 'u32[72,128]{1,0:T(1,128)}', space=vmem, size = 0x9000, scoped, tag = 'internal scratch']
  %s0 = inlined_call_operand.hbm [shape: f32[2,2,32], index: 0, kind: input, shape index: {}]
  %s1 = inlined_call_operand.hbm [shape: f32[2,2,32], index: 1, kind: input, shape index: {}]
  %s2 = inlined_call_operand.hbm [shape: f32[2,32,32], index: 2, kind: input, shape index: {}]
  %s3 = inlined_call_operand.vmem [shape: f32[1,32], index: 3, kind: input, shape index: {}]
  %s4 = inlined_call_operand.hbm [shape: f32[2,2,32], index: 4, kind: output, shape index: {}]
  %s5 = sld [smem:[#allocation0]]
  $region38: #{tpu_custom_call.1} parent=0
    _
  %s7 = ssub.s32 1, %s5
  %s8 = scalar_select 0, %s7, %s5
  $region1: #{tpu_custom_call.1} parent=0
    #allocation2 [shape = 'u8[2048]{0}', space=vmem, size = 0x800, scoped, tag = 'input window, operand 0, single buffered']
    #allocation3 [shape = 's32[1]{0}', space=sflag, size = 0x4, scoped, tag = 'scoped memory for tpu_custom_call.1']
    #allocation4 [shape = 's32[1]{0}', space=sflag, size = 0x4, scoped, tag = 'scoped memory for tpu_custom_call.1']
    #allocation5 [shape = 'u8[2048]{0}', space=vmem, size = 0x800, scoped, tag = 'input window, operand 1, single buffered']
    #allocation6 [shape = 's32[1]{0}', space=sflag, size = 0x4, scoped, tag = 'scoped memory for tpu_custom_call.1']
    #allocation7 [shape = 'u8[32768]{0}', space=vmem, size = 0x8000, scoped, tag = 'input window, operand 2, single buffered']
    #allocation8 [shape = 'u8[2048]{0}', space=vmem, size = 0x800, scoped, tag = 'output window, operand 0, single buffered']
    %9 = vsyncpa [#allocation3], 0
    %10 = vsyncpa [#allocation6], 0
    %11 = vsyncpa [#allocation4], 0
    // Predicated region
    $region2: #{tpu_custom_call.1} parent=1 // pred_check
      _
    $region3: #{tpu_custom_call.1} parent=1 // pred_check_branch
      %13 = sbr.rel (0) target = $region5
    $region4: #{tpu_custom_call.1} parent=1 // pred_region
      %15 = vsyncadd [#allocation3], 0
      %s16 = sshll.u32 %s0, 4
      %s17 = int_to_ptr.hbm [resolvable:$true] %s16
      %s18 = sshll.u32 [#allocation2], 4
      %s19 = int_to_ptr.vmem [resolvable:$true] %s18
      %24 = dma.hbm_to_vmem [thread:$0]  %s17, 64, %s19, [#allocation3], 32, 32, 2
    $region5: #{tpu_custom_call.1} parent=1 // pred_fallthru
      _
    // Predicated region
    $region6: #{tpu_custom_call.1} parent=1 // pred_check
      _
    $region7: #{tpu_custom_call.1} parent=1 // pred_check_branch
      %26 = sbr.rel (0) target = $region9
    $region8: #{tpu_custom_call.1} parent=1 // pred_region
      %28 = vsyncadd [#allocation6], 0
      %s29 = sshll.u32 %s1, 4
      %s30 = int_to_ptr.hbm [resolvable:$true] %s29
      %s31 = sshll.u32 [#allocation5], 4
      %s32 = int_to_ptr.vmem [resolvable:$true] %s31
      %37 = dma.hbm_to_vmem [thread:$0]  %s30, 64, %s32, [#allocation6], 32, 32, 2
    $region9: #{tpu_custom_call.1} parent=1 // pred_fallthru
      _
    // Predicated region
    $region10: #{tpu_custom_call.1} parent=1 // pred_check
      _
    $region11: #{tpu_custom_call.1} parent=1 // pred_check_branch
      %39 = sbr.rel (0) target = $region13
    $region12: #{tpu_custom_call.1} parent=1 // pred_region
      %41 = vsyncadd [#allocation6], 0
      %s42 = sshll.u32 %s2, 4
      %s43 = int_to_ptr.hbm [resolvable:$true] %s42
      %s44 = sshll.u32 [#allocation7], 4
      %s45 = int_to_ptr.vmem [resolvable:$true] %s44
      %50 = dma.hbm_to_vmem [thread:$0]  %s43, 1024, %s45, [#allocation6], 128, 128, 8
    $region13: #{tpu_custom_call.1} parent=1 // pred_fallthru
      _
    // Predicated region
    $region14: #{tpu_custom_call.1} parent=1 // pred_check
      _
    $region15: #{tpu_custom_call.1} parent=1 // pred_check_branch
      %52 = sbr.rel (0) target = $region17
    $region16: #{tpu_custom_call.1} parent=1 // pred_region
      _
    $region17: #{tpu_custom_call.1} parent=1 // pred_fallthru
      _
    // Predicated region
    $region18: #{tpu_custom_call.1} parent=1 // pred_check
      _
    $region19: #{tpu_custom_call.1} parent=1 // pred_check_branch
      %54 = sbr.rel (0) target = $region21
    $region20: #{tpu_custom_call.1} parent=1 // pred_region
      %56 = dma.done [#allocation3], 64
    $region21: #{tpu_custom_call.1} parent=1 // pred_fallthru
      _
    // Predicated region
    $region22: #{tpu_custom_call.1} parent=1 // pred_check
      _
    $region23: #{tpu_custom_call.1} parent=1 // pred_check_branch
      %58 = sbr.rel (0) target = $region25
    $region24: #{tpu_custom_call.1} parent=1 // pred_region
      %60 = dma.done [#allocation6], 64
    $region25: #{tpu_custom_call.1} parent=1 // pred_fallthru
      _
    // Predicated region
    $region26: #{tpu_custom_call.1} parent=1 // pred_check
      _
    $region27: #{tpu_custom_call.1} parent=1 // pred_check_branch
      %62 = sbr.rel (0) target = $region29
    $region28: #{tpu_custom_call.1} parent=1 // pred_region
      %64 = dma.done [#allocation6], 1024
    $region29: #{tpu_custom_call.1} parent=1 // pred_fallthru
      _
    %v65 = vld [vmem:[#allocation7] sm:$0xff]
    %v66 = vld [vmem:[#allocation7 + $0x8] sm:$0xff]
    %v67 = vld [vmem:[#allocation7 + $0x10] sm:$0xff]
    %v68 = vld [vmem:[#allocation7 + $0x18] sm:$0xff]
    %s69 = scalar_lea.vmem [#allocation7], 32
    %v70 = vld [vmem:[%s69] sm:$0xff]
    %v71 = vld [vmem:[%s69 + $0x8] sm:$0xff]
    %v72 = vld [vmem:[%s69 + $0x10] sm:$0xff]
    %v73 = vld [vmem:[%s69 + $0x18] sm:$0xff]
    %v74 = vld [vmem:[%s3] sm:$0x1]
    %v75 = vld [vmem:[#allocation2] sm:$0x3]
    %s76 = scalar_lea.vmem [#allocation2], 2
    %v77 = vld [vmem:[%s76] sm:$0x3]
    %vm78 = vcmask 261120
    %v80 = vsel %vm78, %v77, 0
    %82 = vmatpush.msra.mxu0 0.0
    %83 = vmatpush.msra.mxu0 0.0
    %84 = vmatpush.msra.mxu0 0.0
    %85 = vmatpush.msra.mxu0 0.0
    %86 = vmatpush.msra.mxu0 0.0
    %87 = vmatpush.msra.mxu0 0.0
    %88 = vmatpush.msra.mxu0 0.0
    %89 = vmatpush.msra.mxu0 0.0
    %90 = vmatpush.msra.mxu0 0.0
    %91 = vmatpush.msra.mxu0 0.0
    %92 = vmatpush.msra.mxu0 0.0
    %93 = vmatpush.msra.mxu0 0.0
    %94 = vmatpush.msra.mxu0 %v73
    %95 = vmatpush.msra.mxu0 %v72
    %96 = vmatpush.msra.mxu0 %v71
    %97 = vmatpush.msra.mxu0 %v70
    %98 = vmatmul.f32.gmra.mxu0 %v80
    %v99 = vpop.f32.mrf.mxu0
    %v100 = vadd.f32 0.0, %v99
    %101 = vdwg.mxu0
    %v103 = vsel %vm78, %v75, 0
    %105 = vmatpush.msra.mxu0 0.0
    %106 = vmatpush.msra.mxu0 0.0
    %107 = vmatpush.msra.mxu0 0.0
    %108 = vmatpush.msra.mxu0 0.0
    %109 = vmatpush.msra.mxu0 0.0
    %110 = vmatpush.msra.mxu0 0.0
    %111 = vmatpush.msra.mxu0 0.0
    %112 = vmatpush.msra.mxu0 0.0
    %113 = vmatpush.msra.mxu0 0.0
    %114 = vmatpush.msra.mxu0 0.0
    %115 = vmatpush.msra.mxu0 0.0
    %116 = vmatpush.msra.mxu0 0.0
    %117 = vmatpush.msra.mxu0 %v68
    %118 = vmatpush.msra.mxu0 %v67
    %119 = vmatpush.msra.mxu0 %v66
    %120 = vmatpush.msra.mxu0 %v65
    %121 = vmatmul.f32.gmra.mxu0 %v103
    %v122 = vpop.f32.mrf.mxu0
    %v123 = vadd.f32 %v100, %v122
    %124 = vdwg.mxu0
    %v126 = vperm.slane %v74, 0
    %v128 = vadd.f32 %v123, %v126
    %v129 = vmax.f32 %v128, 0.0
    %vm130 = vcmask 254976
    %131 = vst.msk [vmem:[#allocation8] sm:$0x3] %vm130, %v129
    %v132 = vld [vmem:[#allocation5] sm:$0x3]
    %s133 = scalar_lea.vmem [#allocation5], 2
    %v134 = vld [vmem:[%s133] sm:$0x3]
    %v136 = vsel %vm78, %v134, 0
    %138 = vmatpush.msra.mxu0 0.0
    %139 = vmatpush.msra.mxu0 0.0
    %140 = vmatpush.msra.mxu0 0.0
    %141 = vmatpush.msra.mxu0 0.0
    %142 = vmatpush.msra.mxu0 0.0
    %143 = vmatpush.msra.mxu0 0.0
    %144 = vmatpush.msra.mxu0 0.0
    %145 = vmatpush.msra.mxu0 0.0
    %146 = vmatpush.msra.mxu0 0.0
    %147 = vmatpush.msra.mxu0 0.0
    %148 = vmatpush.msra.mxu0 0.0
    %149 = vmatpush.msra.mxu0 0.0
    %150 = vmatpush.msra.mxu0 %v73
    %151 = vmatpush.msra.mxu0 %v72
    %152 = vmatpush.msra.mxu0 %v71
    %153 = vmatpush.msra.mxu0 %v70
    %154 = vmatmul.f32.gmra.mxu0 %v136
    %v155 = vpop.f32.mrf.mxu0
    %v156 = vadd.f32 0.0, %v155
    %157 = vdwg.mxu0
    %v159 = vsel %vm78, %v132, 0
    %161 = vmatpush.msra.mxu0 0.0
    %162 = vmatpush.msra.mxu0 0.0
    %163 = vmatpush.msra.mxu0 0.0
    %164 = vmatpush.msra.mxu0 0.0
    %165 = vmatpush.msra.mxu0 0.0
    %166 = vmatpush.msra.mxu0 0.0
    %167 = vmatpush.msra.mxu0 0.0
    %168 = vmatpush.msra.mxu0 0.0
    %169 = vmatpush.msra.mxu0 0.0
    %170 = vmatpush.msra.mxu0 0.0
    %171 = vmatpush.msra.mxu0 0.0
    %172 = vmatpush.msra.mxu0 0.0
    %173 = vmatpush.msra.mxu0 %v68
    %174 = vmatpush.msra.mxu0 %v67
    %175 = vmatpush.msra.mxu0 %v66
    %176 = vmatpush.msra.mxu0 %v65
    %177 = vmatmul.f32.gmra.mxu0 %v159
    %v178 = vpop.f32.mrf.mxu0
    %v179 = vadd.f32 %v156, %v178
    %180 = vdwg.mxu0
    %v181 = vadd.f32 %v179, %v126
    %v182 = vmax.f32 %v181, 0.0
    %s183 = scalar_lea.vmem [#allocation8], 2
    %184 = vst.msk [vmem:[%s183] sm:$0x3] %vm130, %v182
    // Predicated region
    $region30: #{tpu_custom_call.1} parent=1 // pred_check
      _
    $region31: #{tpu_custom_call.1} parent=1 // pred_check_branch
      %186 = sbr.rel (0) target = $region33
    $region32: #{tpu_custom_call.1} parent=1 // pred_region
      %188 = vsyncadd [#allocation4], 0
      %s189 = sshll.u32 [#allocation8], 4
      %s190 = int_to_ptr.vmem [resolvable:$true] %s189
      %s191 = sshll.u32 %s4, 4
      %s192 = int_to_ptr.hbm [resolvable:$true] %s191
      %197 = dma.vmem_to_hbm [thread:$0]  %s190, 64, %s192, [#allocation4], 32, 32, 2
    $region33: #{tpu_custom_call.1} parent=1 // pred_fallthru
      _
    // Predicated region
    $region34: #{tpu_custom_call.1} parent=1 // pred_check
      _
    $region35: #{tpu_custom_call.1} parent=1 // pred_check_branch
      %199 = sbr.rel (0) target = $region37
    $region36: #{tpu_custom_call.1} parent=1 // pred_region
      %201 = dma.done [#allocation4], 64
    $region37: #{tpu_custom_call.1} parent=1 // pred_fallthru
      _
    %202 = vsyncpa [#allocation3], 1
    %203 = vsyncpa [#allocation6], 1
    %204 = vsyncpa [#allocation4], 1

// kernel: tpu_custom_call.1
$region0: #{tpu_custom_call.1}
  #allocation0 [shape = 'u32[]', space=smem, size = 0x4, offset = 0x4, fixed_abs, tag = 'smem constant byte address 0x4 - core index']
  #allocation1 [shape = 'u32[72,128]{1,0:T(1,128)}', space=vmem, size = 0x9000, scoped, tag = 'internal scratch']
  %s0 = inlined_call_operand.hbm [shape: f32[2,2,32], index: 0, kind: input, shape index: {}]
  %s1 = inlined_call_operand.hbm [shape: f32[2,2,32], index: 1, kind: input, shape index: {}]
  %s2 = inlined_call_operand.hbm [shape: f32[2,32,32], index: 2, kind: input, shape index: {}]
  %s3 = inlined_call_operand.vmem [shape: f32[1,32], index: 3, kind: input, shape index: {}]
  %s4 = inlined_call_operand.hbm [shape: f32[2,2,32], index: 4, kind: output, shape index: {}]
  %s5 = sld [smem:[#allocation0]]
  $region38: #{tpu_custom_call.1} parent=0
    _
  %s7 = ssub.s32 1, %s5
  %s8 = scalar_select 0, %s7, %s5
  $region1: #{tpu_custom_call.1} parent=0
    #allocation2 [shape = 'u8[2048]{0}', space=vmem, size = 0x800, scoped, tag = 'input window, operand 0, single buffered']
    #allocation3 [shape = 's32[1]{0}', space=sflag, size = 0x4, scoped, tag = 'scoped memory for tpu_custom_call.1']
    #allocation4 [shape = 's32[1]{0}', space=sflag, size = 0x4, scoped, tag = 'scoped memory for tpu_custom_call.1']
    #allocation5 [shape = 'u8[2048]{0}', space=vmem, size = 0x800, scoped, tag = 'input window, operand 1, single buffered']
    #allocation6 [shape = 's32[1]{0}', space=sflag, size = 0x4, scoped, tag = 'scoped memory for tpu_custom_call.1']
    #allocation7 [shape = 'u8[32768]{0}', space=vmem, size = 0x8000, scoped, tag = 'input window, operand 2, single buffered']
    #allocation8 [shape = 'u8[2048]{0}', space=vmem, size = 0x800, scoped, tag = 'output window, operand 0, single buffered']
    %9 = vsyncpa [#allocation3], 0
    %10 = vsyncpa [#allocation6], 0
    %11 = vsyncpa [#allocation4], 0
    // Predicated region
    $region2: #{tpu_custom_call.1} parent=1 // pred_check
      _
    $region3: #{tpu_custom_call.1} parent=1 // pred_check_branch
      %13 = sbr.rel (0) target = $region5
    $region4: #{tpu_custom_call.1} parent=1 // pred_region
      %15 = vsyncadd [#allocation3], 0
      %s16 = sshll.u32 %s0, 4
      %s17 = int_to_ptr.hbm [resolvable:$true] %s16
      %s18 = sshll.u32 [#allocation2], 4
      %s19 = int_to_ptr.vmem [resolvable:$true] %s18
      %24 = dma.hbm_to_vmem [thread:$0]  %s17, 64, %s19, [#allocation3], 32, 32, 2
    $region5: #{tpu_custom_call.1} parent=1 // pred_fallthru
      _
    // Predicated region
    $region6: #{tpu_custom_call.1} parent=1 // pred_check
      _
    $region7: #{tpu_custom_call.1} parent=1 // pred_check_branch
      %26 = sbr.rel (0) target = $region9
    $region8: #{tpu_custom_call.1} parent=1 // pred_region
      %28 = vsyncadd [#allocation6], 0
      %s29 = sshll.u32 %s1, 4
      %s30 = int_to_ptr.hbm [resolvable:$true] %s29
      %s31 = sshll.u32 [#allocation5], 4
      %s32 = int_to_ptr.vmem [resolvable:$true] %s31
      %37 = dma.hbm_to_vmem [thread:$0]  %s30, 64, %s32, [#allocation6], 32, 32, 2
    $region9: #{tpu_custom_call.1} parent=1 // pred_fallthru
      _
    // Predicated region
    $region10: #{tpu_custom_call.1} parent=1 // pred_check
      _
    $region11: #{tpu_custom_call.1} parent=1 // pred_check_branch
      %39 = sbr.rel (0) target = $region13
    $region12: #{tpu_custom_call.1} parent=1 // pred_region
      %41 = vsyncadd [#allocation6], 0
      %s42 = sshll.u32 %s2, 4
      %s43 = int_to_ptr.hbm [resolvable:$true] %s42
      %s44 = sshll.u32 [#allocation7], 4
      %s45 = int_to_ptr.vmem [resolvable:$true] %s44
      %50 = dma.hbm_to_vmem [thread:$0]  %s43, 1024, %s45, [#allocation6], 128, 128, 8
    $region13: #{tpu_custom_call.1} parent=1 // pred_fallthru
      _
    // Predicated region
    $region14: #{tpu_custom_call.1} parent=1 // pred_check
      _
    $region15: #{tpu_custom_call.1} parent=1 // pred_check_branch
      %52 = sbr.rel (0) target = $region17
    $region16: #{tpu_custom_call.1} parent=1 // pred_region
      _
    $region17: #{tpu_custom_call.1} parent=1 // pred_fallthru
      _
    // Predicated region
    $region18: #{tpu_custom_call.1} parent=1 // pred_check
      _
    $region19: #{tpu_custom_call.1} parent=1 // pred_check_branch
      %54 = sbr.rel (0) target = $region21
    $region20: #{tpu_custom_call.1} parent=1 // pred_region
      %56 = dma.done [#allocation3], 64
    $region21: #{tpu_custom_call.1} parent=1 // pred_fallthru
      _
    // Predicated region
    $region22: #{tpu_custom_call.1} parent=1 // pred_check
      _
    $region23: #{tpu_custom_call.1} parent=1 // pred_check_branch
      %58 = sbr.rel (0) target = $region25
    $region24: #{tpu_custom_call.1} parent=1 // pred_region
      %60 = dma.done [#allocation6], 64
    $region25: #{tpu_custom_call.1} parent=1 // pred_fallthru
      _
    // Predicated region
    $region26: #{tpu_custom_call.1} parent=1 // pred_check
      _
    $region27: #{tpu_custom_call.1} parent=1 // pred_check_branch
      %62 = sbr.rel (0) target = $region29
    $region28: #{tpu_custom_call.1} parent=1 // pred_region
      %64 = dma.done [#allocation6], 1024
    $region29: #{tpu_custom_call.1} parent=1 // pred_fallthru
      _
    %v65 = vld [vmem:[#allocation7] sm:$0xff]
    %v66 = vld [vmem:[#allocation7 + $0x8] sm:$0xff]
    %v67 = vld [vmem:[#allocation7 + $0x10] sm:$0xff]
    %v68 = vld [vmem:[#allocation7 + $0x18] sm:$0xff]
    %s69 = scalar_lea.vmem [#allocation7], 32
    %v70 = vld [vmem:[%s69] sm:$0xff]
    %v71 = vld [vmem:[%s69 + $0x8] sm:$0xff]
    %v72 = vld [vmem:[%s69 + $0x10] sm:$0xff]
    %v73 = vld [vmem:[%s69 + $0x18] sm:$0xff]
    %v74 = vld [vmem:[%s3] sm:$0x1]
    %v75 = vld [vmem:[#allocation2] sm:$0x3]
    %s76 = scalar_lea.vmem [#allocation2], 2
    %v77 = vld [vmem:[%s76] sm:$0x3]
    %vm78 = vcmask 261120
    %v80 = vsel %vm78, %v77, 0
    %82 = vmatpush.msra.mxu0 0.0
    %83 = vmatpush.msra.mxu0 0.0
    %84 = vmatpush.msra.mxu0 0.0
    %85 = vmatpush.msra.mxu0 0.0
    %86 = vmatpush.msra.mxu0 0.0
    %87 = vmatpush.msra.mxu0 0.0
    %88 = vmatpush.msra.mxu0 0.0
    %89 = vmatpush.msra.mxu0 0.0
    %90 = vmatpush.msra.mxu0 0.0
    %91 = vmatpush.msra.mxu0 0.0
    %92 = vmatpush.msra.mxu0 0.0
    %93 = vmatpush.msra.mxu0 0.0
    %94 = vmatpush.msra.mxu0 %v73
    %95 = vmatpush.msra.mxu0 %v72
    %96 = vmatpush.msra.mxu0 %v71
    %97 = vmatpush.msra.mxu0 %v70
    %98 = vmatmul.f32.gmra.mxu0 %v80
    %v99 = vpop.f32.mrf.mxu0
    %v100 = vadd.f32 0.0, %v99
    %101 = vdwg.mxu0
    %v103 = vsel %vm78, %v75, 0
    %105 = vmatpush.msra.mxu0 0.0
    %106 = vmatpush.msra.mxu0 0.0
    %107 = vmatpush.msra.mxu0 0.0
    %108 = vmatpush.msra.mxu0 0.0
    %109 = vmatpush.msra.mxu0 0.0
    %110 = vmatpush.msra.mxu0 0.0
    %111 = vmatpush.msra.mxu0 0.0
    %112 = vmatpush.msra.mxu0 0.0
    %113 = vmatpush.msra.mxu0 0.0
    %114 = vmatpush.msra.mxu0 0.0
    %115 = vmatpush.msra.mxu0 0.0
    %116 = vmatpush.msra.mxu0 0.0
    %117 = vmatpush.msra.mxu0 %v68
    %118 = vmatpush.msra.mxu0 %v67
    %119 = vmatpush.msra.mxu0 %v66
    %120 = vmatpush.msra.mxu0 %v65
    %121 = vmatmul.f32.gmra.mxu0 %v103
    %v122 = vpop.f32.mrf.mxu0
    %v123 = vadd.f32 %v100, %v122
    %124 = vdwg.mxu0
    %v126 = vperm.slane %v74, 0
    %v128 = vadd.f32 %v123, %v126
    %v129 = vmax.f32 %v128, 0.0
    %vm130 = vcmask 254976
    %131 = vst.msk [vmem:[#allocation8] sm:$0x3] %vm130, %v129
    %v132 = vld [vmem:[#allocation5] sm:$0x3]
    %s133 = scalar_lea.vmem [#allocation5], 2
    %v134 = vld [vmem:[%s133] sm:$0x3]
    %v136 = vsel %vm78, %v134, 0
    %138 = vmatpush.msra.mxu0 0.0
    %139 = vmatpush.msra.mxu0 0.0
    %140 = vmatpush.msra.mxu0 0.0
    %141 = vmatpush.msra.mxu0 0.0
    %142 = vmatpush.msra.mxu0 0.0
    %143 = vmatpush.msra.mxu0 0.0
    %144 = vmatpush.msra.mxu0 0.0
    %145 = vmatpush.msra.mxu0 0.0
    %146 = vmatpush.msra.mxu0 0.0
    %147 = vmatpush.msra.mxu0 0.0
    %148 = vmatpush.msra.mxu0 0.0
    %149 = vmatpush.msra.mxu0 0.0
    %150 = vmatpush.msra.mxu0 %v73
    %151 = vmatpush.msra.mxu0 %v72
    %152 = vmatpush.msra.mxu0 %v71
    %153 = vmatpush.msra.mxu0 %v70
    %154 = vmatmul.f32.gmra.mxu0 %v136
    %v155 = vpop.f32.mrf.mxu0
    %v156 = vadd.f32 0.0, %v155
    %157 = vdwg.mxu0
    %v159 = vsel %vm78, %v132, 0
    %161 = vmatpush.msra.mxu0 0.0
    %162 = vmatpush.msra.mxu0 0.0
    %163 = vmatpush.msra.mxu0 0.0
    %164 = vmatpush.msra.mxu0 0.0
    %165 = vmatpush.msra.mxu0 0.0
    %166 = vmatpush.msra.mxu0 0.0
    %167 = vmatpush.msra.mxu0 0.0
    %168 = vmatpush.msra.mxu0 0.0
    %169 = vmatpush.msra.mxu0 0.0
    %170 = vmatpush.msra.mxu0 0.0
    %171 = vmatpush.msra.mxu0 0.0
    %172 = vmatpush.msra.mxu0 0.0
    %173 = vmatpush.msra.mxu0 %v68
    %174 = vmatpush.msra.mxu0 %v67
    %175 = vmatpush.msra.mxu0 %v66
    %176 = vmatpush.msra.mxu0 %v65
    %177 = vmatmul.f32.gmra.mxu0 %v159
    %v178 = vpop.f32.mrf.mxu0
    %v179 = vadd.f32 %v156, %v178
    %180 = vdwg.mxu0
    %v181 = vadd.f32 %v179, %v126
    %v182 = vmax.f32 %v181, 0.0
    %s183 = scalar_lea.vmem [#allocation8], 2
    %184 = vst.msk [vmem:[%s183] sm:$0x3] %vm130, %v182
    // Predicated region
    $region30: #{tpu_custom_call.1} parent=1 // pred_check
      _
    $region31: #{tpu_custom_call.1} parent=1 // pred_check_branch
      %186 = sbr.rel (0) target = $region33
    $region32: #{tpu_custom_call.1} parent=1 // pred_region
      %188 = vsyncadd [#allocation4], 0
      %s189 = sshll.u32 [#allocation8], 4
      %s190 = int_to_ptr.vmem [resolvable:$true] %s189
      %s191 = sshll.u32 %s4, 4
      %s192 = int_to_ptr.hbm [resolvable:$true] %s191
      %197 = dma.vmem_to_hbm [thread:$0]  %s190, 64, %s192, [#allocation4], 32, 32, 2
    $region33: #{tpu_custom_call.1} parent=1 // pred_fallthru
      _
    // Predicated region
    $region34: #{tpu_custom_call.1} parent=1 // pred_check
      _
    $region35: #{tpu_custom_call.1} parent=1 // pred_check_branch
      %199 = sbr.rel (0) target = $region37
    $region36: #{tpu_custom_call.1} parent=1 // pred_region
      %201 = dma.done [#allocation4], 64
    $region37: #{tpu_custom_call.1} parent=1 // pred_fallthru
      _
    %202 = vsyncpa [#allocation3], 1
    %203 = vsyncpa [#allocation6], 1
    %204 = vsyncpa [#allocation4], 1

</llo_original>
